<compile_context>
chip_gen: v7x
topology: tpu7x:2x2x1
jax: 0.10.0
libtpu: 0.0.40
codegen_flags: <defaults>
</compile_context>

<pallas_src>
import functools

import jax
import jax.numpy as jnp
from jax.experimental import pallas as pl
from jax.experimental.pallas import tpu as pltpu


def _round_up(x, m):
    return ((x + m - 1) // m) * m


def _mlp_kernel(x_ref, bw_ref, bb_ref, hw_ref, hb_ref, ew_ref, eb_ref,
                o_ref, h_ref):
    """One grid step = one hidden layer (plus begin at l==0, end at l==last).

    x_ref  : (tm, Din)        input tile (resident across layer axis)
    bw_ref : (Din, H) bf16    begin weight (resident)
    bb_ref : (1, H)   f32     begin bias
    hw_ref : (1, H, H) bf16   hidden weight for layer l (pipelined per step)
    hb_ref : (1, 1, H) f32    hidden bias for layer l
    ew_ref : (H, Npad) bf16   end weight (output padded to lane-dense width)
    eb_ref : (1, Npad) f32    end bias
    o_ref  : (tm, Npad)       output tile
    h_ref  : (tm, H)   f32    VMEM-resident activation carried across layers
    """
    l = pl.program_id(1)

    # --- begin layer: h = relu(x @ Wb + bb), only on the first layer step ---
    @pl.when(l == 0)
    def _():
        xb = x_ref[...].astype(jnp.bfloat16)
        h0 = jnp.dot(xb, bw_ref[...], preferred_element_type=jnp.float32)
        h0 = h0 + bb_ref[...]
        h_ref[...] = jnp.maximum(h0, 0.0)

    # --- hidden layer l: h = relu(h @ Wl + bl) ------------------------------
    hb = h_ref[...].astype(jnp.bfloat16)
    h = jnp.dot(hb, hw_ref[0], preferred_element_type=jnp.float32)
    h = h + hb_ref[0]
    h_ref[...] = jnp.maximum(h, 0.0)

    # --- end layer: out = h @ We + be, only on the last layer step ----------
    @pl.when(l == pl.num_programs(1) - 1)
    def _():
        h2 = h_ref[...].astype(jnp.bfloat16)
        out = jnp.dot(h2, ew_ref[...], preferred_element_type=jnp.float32)
        out = out + eb_ref[...]
        o_ref[...] = out.astype(o_ref.dtype)


def mlp_forward(x, begin_w, begin_b, hid_w, hid_b, end_w, end_b,
                *, output_dim, tm=None):
    """Fused MLP forward.

    x       : (M, Din) f32
    begin_w : (Din, H) bf16      begin_b : (H,)  f32
    hid_w   : (L, H, H) bf16     hid_b   : (L, H) f32
    end_w   : (H, Npad) bf16     end_b   : (Npad,) f32   (zero-padded cols)
    Returns (M, output_dim).
    """
    M, Din = x.shape
    H = begin_w.shape[1]
    L = hid_w.shape[0]
    Npad = end_w.shape[1]
    assert L >= 1

    tm = M if tm is None else tm
    assert M % tm == 0

    out = pl.pallas_call(
        _mlp_kernel,
        out_shape=jax.ShapeDtypeStruct((M, Npad), x.dtype),
        grid_spec=pltpu.PrefetchScalarGridSpec(
            num_scalar_prefetch=0,
            grid=(M // tm, L),
            in_specs=[
                pl.BlockSpec((tm, Din), lambda i, l: (i, 0)),
                pl.BlockSpec((Din, H), lambda i, l: (0, 0)),
                pl.BlockSpec((1, H), lambda i, l: (0, 0)),
                # per-layer hidden weights: indexed by the layer grid axis so
                # Pallas prefetches layer l+1 while layer l is computed.
                pl.BlockSpec((1, H, H), lambda i, l: (l, 0, 0)),
                pl.BlockSpec((1, 1, H), lambda i, l: (l, 0, 0)),
                pl.BlockSpec((H, Npad), lambda i, l: (0, 0)),
                pl.BlockSpec((1, Npad), lambda i, l: (0, 0)),
            ],
            out_specs=pl.BlockSpec((tm, Npad), lambda i, l: (i, 0)),
            scratch_shapes=[pltpu.VMEM((tm, H), jnp.float32)],
        ),
        compiler_params=pltpu.CompilerParams(
            dimension_semantics=("parallel", "arbitrary"),
            vmem_limit_bytes=32 * 1024 * 1024,
        ),
    )(x, begin_w, begin_b.reshape(1, H), hid_w, hid_b.reshape(L, 1, H),
      end_w, end_b.reshape(1, Npad))

    return out[:, :output_dim]


class MLPModelPallas:
    """Pallas re-implementation of MLPModel.forward (single fused kernel).

    forward(x):
      x1 = relu(begin(x))
      x2 = hidden(x1)   # num_layers x (Linear + ReLU)
      # torch.relu(x2) again is a no-op on already-ReLU'd data -> dropped
      x3 = end(x2)
    """

    def __init__(self, input_dim, output_dim, num_layers=2, hidden_size=2048,
                 key=jax.random.PRNGKey(0)):
        assert num_layers >= 1
        self.input_dim = input_dim
        self.output_dim = output_dim
        self.num_layers = num_layers
        self.hidden_size = hidden_size
        self.out_pad = _round_up(output_dim, 128)

        def init_linear(key, fan_in, fan_out):
            kw, kb = jax.random.split(key)
            bound = 1.0 / jnp.sqrt(fan_in)
            w = jax.random.uniform(kw, (fan_in, fan_out), jnp.float32,
                                   minval=-bound, maxval=bound)
            b = jax.random.uniform(kb, (fan_out,), jnp.float32,
                                   minval=-bound, maxval=bound)
            return w, b

        keys = jax.random.split(key, num_layers + 2)
        bw, bb = init_linear(keys[0], input_dim, hidden_size)
        self.begin_w = bw.astype(jnp.bfloat16)        # stream weights in bf16
        self.begin_b = bb                             # biases stay f32

        hw, hb = [], []
        for i in range(num_layers):
            w, b = init_linear(keys[1 + i], hidden_size, hidden_size)
            hw.append(w.astype(jnp.bfloat16))
            hb.append(b)
        self.hid_w = jnp.stack(hw)                    # (L, H, H) bf16
        self.hid_b = jnp.stack(hb)                    # (L, H)    f32

        ew, eb = init_linear(keys[-1], hidden_size, output_dim)
        # Pad the end layer to a lane-dense (multiple of 128) output width.
        ew_pad = jnp.zeros((hidden_size, self.out_pad), jnp.float32)
        ew_pad = ew_pad.at[:, :output_dim].set(ew)
        eb_pad = jnp.zeros((self.out_pad,), jnp.float32)
        eb_pad = eb_pad.at[:output_dim].set(eb)
        self.end_w = ew_pad.astype(jnp.bfloat16)      # (H, Npad) bf16
        self.end_b = eb_pad                           # (Npad,)   f32

    def __call__(self, x):
        return mlp_forward(x, self.begin_w, self.begin_b,
                           self.hid_w, self.hid_b,
                           self.end_w, self.end_b,
                           output_dim=self.output_dim)


if __name__ == "__main__":
    key = jax.random.PRNGKey(0)
    k_in, k_params = jax.random.split(key)

    batch = 8
    input_dim = 32
    hidden_size = 128
    output_dim = 16
    num_layers = 2

    x = jax.random.normal(k_in, (batch, input_dim), jnp.float32)

    model = MLPModelPallas(input_dim=input_dim, output_dim=output_dim,
                           num_layers=num_layers, hidden_size=hidden_size,
                           key=k_params)

    out = jax.block_until_ready(model(x))
    assert out.shape == (batch, output_dim), out.shape

    # Reference in plain JAX mirroring the kernel math (bf16 weights/operands,
    # f32 accumulation), same params.
    def ref_forward(x):
        def lin(h, w_bf16, b_f32):
            return jnp.dot(h.astype(jnp.bfloat16), w_bf16,
                           preferred_element_type=jnp.float32) + b_f32
        h = jnp.maximum(lin(x, model.begin_w, model.begin_b), 0.0)
        for l in range(model.num_layers):
            h = jnp.maximum(lin(h, model.hid_w[l], model.hid_b[l]), 0.0)
        h = jnp.maximum(h, 0.0)   # redundant relu from the PyTorch spec (no-op)
        return lin(h, model.end_w, model.end_b)[:, :model.output_dim]

    ref = jax.block_until_ready(ref_forward(x))
    assert jnp.allclose(out, ref, atol=1e-3, rtol=1e-3), \
        float(jnp.max(jnp.abs(out - ref)))

    print("KERNEL_OK")
</pallas_src>

<mosaic_0001>
module attributes {stable_mosaic.version = 11 : i64} {
  func.func @_mlp_kernel(%arg0: i32, %arg1: i32, %arg2: memref<8x32xf32, #tpu.memory_space<vmem>>, %arg3: memref<32x128xbf16, #tpu.memory_space<vmem>>, %arg4: memref<1x128xf32, #tpu.memory_space<vmem>>, %arg5: memref<1x128x128xbf16, #tpu.memory_space<vmem>>, %arg6: memref<1x1x128xf32, #tpu.memory_space<vmem>>, %arg7: memref<128x128xbf16, #tpu.memory_space<vmem>>, %arg8: memref<1x128xf32, #tpu.memory_space<vmem>>, %arg9: memref<8x128xf32, #tpu.memory_space<vmem>>, %arg10: memref<8x128xf32, #tpu.memory_space<vmem>>) attributes {dimension_semantics = [#tpu.dimension_semantics<parallel>, #tpu.dimension_semantics<arbitrary>], iteration_bounds = array<i64: 1, 2>, scalar_prefetch = 0 : i64, scratch_operands = 1 : i64, tpu.core_type = #tpu.core_type<tc>, window_params = [{transform_indices = @transform_0, window_bounds = array<i64: 8, 32>}, {pipeline_mode = #tpu.pipeline_mode<synchronous>, transform_indices = @transform_1, window_bounds = array<i64: 32, 128>}, {pipeline_mode = #tpu.pipeline_mode<synchronous>, transform_indices = @transform_2, window_bounds = array<i64: 1, 128>}, {transform_indices = @transform_3, window_bounds = array<i64: 1, 128, 128>}, {transform_indices = @transform_4, window_bounds = array<i64: 1, 1, 128>}, {pipeline_mode = #tpu.pipeline_mode<synchronous>, transform_indices = @transform_5, window_bounds = array<i64: 128, 128>}, {pipeline_mode = #tpu.pipeline_mode<synchronous>, transform_indices = @transform_6, window_bounds = array<i64: 1, 128>}, {transform_indices = @transform_7, window_bounds = array<i64: 8, 128>}]} {
    %c0_i32 = arith.constant 0 : i32
    %0 = arith.cmpi eq, %arg1, %c0_i32 : i32
    %1 = arith.extui %0 : i1 to i32
    %c0_i32_0 = arith.constant 0 : i32
    %2 = arith.cmpi ne, %1, %c0_i32_0 : i32
    scf.if %2 {
      %c0_12 = arith.constant 0 : index
      %c0_13 = arith.constant 0 : index
      %18 = vector.load %arg2[%c0_12, %c0_13] : memref<8x32xf32, #tpu.memory_space<vmem>>, vector<8x32xf32>
      %19 = arith.truncf %18 : vector<8x32xf32> to vector<8x32xbf16>
      %c0_14 = arith.constant 0 : index
      %c0_15 = arith.constant 0 : index
      %20 = vector.load %arg3[%c0_14, %c0_15] : memref<32x128xbf16, #tpu.memory_space<vmem>>, vector<32x128xbf16>
      %cst_16 = arith.constant dense<0.000000e+00> : vector<8x128xf32>
      %21 = tpu.matmul %19, %20, %cst_16 {dimension_numbers = #tpu.dot_dimension_numbers<[1], [0], [0], [1], [0, 0, 1, 1], [], []>} : vector<8x32xbf16>, vector<32x128xbf16>, vector<8x128xf32> -> vector<8x128xf32>
      %c0_17 = arith.constant 0 : index
      %c0_18 = arith.constant 0 : index
      %22 = vector.load %arg4[%c0_17, %c0_18] : memref<1x128xf32, #tpu.memory_space<vmem>>, vector<1x128xf32>
      %23 = vector.broadcast %22 : vector<1x128xf32> to vector<8x128xf32>
      %24 = arith.addf %21, %23 : vector<8x128xf32>
      %cst_19 = arith.constant 0.000000e+00 : f32
      %25 = vector.broadcast %cst_19 : f32 to vector<8x128xf32>
      %26 = arith.maximumf %24, %25 : vector<8x128xf32>
      %c0_20 = arith.constant 0 : index
      %c0_21 = arith.constant 0 : index
      %27 = vector.load %arg10[%c0_20, %c0_21] : memref<8x128xf32, #tpu.memory_space<vmem>>, vector<8x128xf32>
      tpu.vector_store %arg10[%c0_20, %c0_21], %26 {strides = array<i32>} : memref<8x128xf32, #tpu.memory_space<vmem>>, vector<8x128xf32>,
    } else {
    }
    %c0 = arith.constant 0 : index
    %c0_1 = arith.constant 0 : index
    %3 = vector.load %arg10[%c0, %c0_1] : memref<8x128xf32, #tpu.memory_space<vmem>>, vector<8x128xf32>
    %4 = arith.truncf %3 : vector<8x128xf32> to vector<8x128xbf16>
    %c0_2 = arith.constant 0 : index
    %c0_3 = arith.constant 0 : index
    %c0_4 = arith.constant 0 : index
    %5 = vector.load %arg5[%c0_2, %c0_3, %c0_4] : memref<1x128x128xbf16, #tpu.memory_space<vmem>>, vector<1x128x128xbf16>
    %6 = vector.shape_cast %5 : vector<1x128x128xbf16> to vector<128x128xbf16>
    %cst = arith.constant dense<0.000000e+00> : vector<8x128xf32>
    %7 = tpu.matmul %4, %6, %cst {dimension_numbers = #tpu.dot_dimension_numbers<[1], [0], [0], [1], [0, 0, 1, 1], [], []>} : vector<8x128xbf16>, vector<128x128xbf16>, vector<8x128xf32> -> vector<8x128xf32>
    %c0_5 = arith.constant 0 : index
    %c0_6 = arith.constant 0 : index
    %c0_7 = arith.constant 0 : index
    %8 = vector.load %arg6[%c0_5, %c0_6, %c0_7] : memref<1x1x128xf32, #tpu.memory_space<vmem>>, vector<1x1x128xf32>
    %9 = vector.shape_cast %8 : vector<1x1x128xf32> to vector<1x128xf32>
    %10 = vector.broadcast %9 : vector<1x128xf32> to vector<8x128xf32>
    %11 = arith.addf %7, %10 : vector<8x128xf32>
    %cst_8 = arith.constant 0.000000e+00 : f32
    %12 = vector.broadcast %cst_8 : f32 to vector<8x128xf32>
    %13 = arith.maximumf %11, %12 : vector<8x128xf32>
    %c0_9 = arith.constant 0 : index
    %c0_10 = arith.constant 0 : index
    %14 = vector.load %arg10[%c0_9, %c0_10] : memref<8x128xf32, #tpu.memory_space<vmem>>, vector<8x128xf32>
    tpu.vector_store %arg10[%c0_9, %c0_10], %13 {strides = array<i32>} : memref<8x128xf32, #tpu.memory_space<vmem>>, vector<8x128xf32>,
    %c1_i32 = arith.constant 1 : i32
    %15 = arith.cmpi eq, %arg1, %c1_i32 : i32
    %16 = arith.extui %15 : i1 to i32
    %c0_i32_11 = arith.constant 0 : i32
    %17 = arith.cmpi ne, %16, %c0_i32_11 : i32
    scf.if %17 {
      %c0_12 = arith.constant 0 : index
      %c0_13 = arith.constant 0 : index
      %18 = vector.load %arg10[%c0_12, %c0_13] : memref<8x128xf32, #tpu.memory_space<vmem>>, vector<8x128xf32>
      %19 = arith.truncf %18 : vector<8x128xf32> to vector<8x128xbf16>
      %c0_14 = arith.constant 0 : index
      %c0_15 = arith.constant 0 : index
      %20 = vector.load %arg7[%c0_14, %c0_15] : memref<128x128xbf16, #tpu.memory_space<vmem>>, vector<128x128xbf16>
      %cst_16 = arith.constant dense<0.000000e+00> : vector<8x128xf32>
      %21 = tpu.matmul %19, %20, %cst_16 {dimension_numbers = #tpu.dot_dimension_numbers<[1], [0], [0], [1], [0, 0, 1, 1], [], []>} : vector<8x128xbf16>, vector<128x128xbf16>, vector<8x128xf32> -> vector<8x128xf32>
      %c0_17 = arith.constant 0 : index
      %c0_18 = arith.constant 0 : index
      %22 = vector.load %arg8[%c0_17, %c0_18] : memref<1x128xf32, #tpu.memory_space<vmem>>, vector<1x128xf32>
      %23 = vector.broadcast %22 : vector<1x128xf32> to vector<8x128xf32>
      %24 = arith.addf %21, %23 : vector<8x128xf32>
      %c0_19 = arith.constant 0 : index
      %c0_20 = arith.constant 0 : index
      %25 = vector.load %arg9[%c0_19, %c0_20] : memref<8x128xf32, #tpu.memory_space<vmem>>, vector<8x128xf32>
      tpu.vector_store %arg9[%c0_19, %c0_20], %24 {strides = array<i32>} : memref<8x128xf32, #tpu.memory_space<vmem>>, vector<8x128xf32>,
    } else {
    }
    return
  }
  func.func @transform_0(%arg0: i32, %arg1: i32) -> (i32, i32) {
    %c0_i32 = arith.constant 0 : i32
    %c0_i32_0 = arith.constant 0 : i32
    return %arg0, %c0_i32 : i32, i32
  }
  func.func @transform_1(%arg0: i32, %arg1: i32) -> (i32, i32) {
    %c0_i32 = arith.constant 0 : i32
    %c0_i32_0 = arith.constant 0 : i32
    %c0_i32_1 = arith.constant 0 : i32
    return %c0_i32, %c0_i32_0 : i32, i32
  }
  func.func @transform_2(%arg0: i32, %arg1: i32) -> (i32, i32) {
    %c0_i32 = arith.constant 0 : i32
    %c0_i32_0 = arith.constant 0 : i32
    %c0_i32_1 = arith.constant 0 : i32
    return %c0_i32, %c0_i32_0 : i32, i32
  }
  func.func @transform_3(%arg0: i32, %arg1: i32) -> (i32, i32, i32) {
    %c0_i32 = arith.constant 0 : i32
    %c0_i32_0 = arith.constant 0 : i32
    %c0_i32_1 = arith.constant 0 : i32
    return %arg1, %c0_i32, %c0_i32_0 : i32, i32, i32
  }
  func.func @transform_4(%arg0: i32, %arg1: i32) -> (i32, i32, i32) {
    %c0_i32 = arith.constant 0 : i32
    %c0_i32_0 = arith.constant 0 : i32
    %c0_i32_1 = arith.constant 0 : i32
    return %arg1, %c0_i32, %c0_i32_0 : i32, i32, i32
  }
  func.func @transform_5(%arg0: i32, %arg1: i32) -> (i32, i32) {
    %c0_i32 = arith.constant 0 : i32
    %c0_i32_0 = arith.constant 0 : i32
    %c0_i32_1 = arith.constant 0 : i32
    return %c0_i32, %c0_i32_0 : i32, i32
  }
  func.func @transform_6(%arg0: i32, %arg1: i32) -> (i32, i32) {
    %c0_i32 = arith.constant 0 : i32
    %c0_i32_0 = arith.constant 0 : i32
    %c0_i32_1 = arith.constant 0 : i32
    return %c0_i32, %c0_i32_0 : i32, i32
  }
  func.func @transform_7(%arg0: i32, %arg1: i32) -> (i32, i32) {
    %c0_i32 = arith.constant 0 : i32
    %c0_i32_0 = arith.constant 0 : i32
    return %arg0, %c0_i32 : i32, i32
  }
}

</mosaic_0001>

<llo_original>
// kernel: tpu_custom_call.1
$region0: #{tpu_custom_call.1}
  #allocation0 [shape = 'u32[]', space=smem, size = 0x4, offset = 0x4, fixed_abs, tag = 'smem constant byte address 0x4 - core index']
  #allocation1 [shape = 'u32[144,128]{1,0:T(1,128)}', space=vmem, size = 0x12000, scoped, tag = 'internal scratch']
  #allocation2 [shape = 'f32[8,128]{1,0:T(8,128)}', space=vmem, size = 0x1000, scoped, tag = 'scratch operand']
  %s0 = inlined_call_operand.hbm [shape: f32[8,32], index: 0, kind: input, shape index: {}]
  %s1 = inlined_call_operand.hbm [shape: bf16[32,128], index: 1, kind: input, shape index: {}]
  %s2 = inlined_call_operand.vmem [shape: f32[1,128], index: 2, kind: input, shape index: {}]
  %s3 = inlined_call_operand.hbm [shape: bf16[2,128,128], index: 3, kind: input, shape index: {}]
  %s4 = inlined_call_operand.vmem [shape: f32[2,1,128], index: 4, kind: input, shape index: {}]
  %s5 = inlined_call_operand.hbm [shape: bf16[128,128], index: 5, kind: input, shape index: {}]
  %s6 = inlined_call_operand.vmem [shape: f32[1,128], index: 6, kind: input, shape index: {}]
  %s7 = inlined_call_operand.hbm [shape: f32[8,128], index: 7, kind: output, shape index: {}]
  %s8 = sld [smem:[#allocation0]]
  $region85: #{tpu_custom_call.1} parent=0
    _
  %s10 = ssub.s32 1, %s8
  %s11 = scalar_select 0, %s10, %s8
  $region1: #{tpu_custom_call.1} parent=0
    #allocation3 [shape = 'u8[4096]{0}', space=vmem, size = 0x1000, scoped, tag = 'input window, operand 0, single buffered']
    #allocation4 [shape = 's32[2]{0}', space=sflag, size = 0x8, scoped, tag = 'scoped memory for tpu_custom_call.1']
    #allocation5 [shape = 's32[2]{0}', space=sflag, size = 0x8, scoped, tag = 'scoped memory for tpu_custom_call.1']
    #allocation6 [shape = 'u8[8192]{0}', space=vmem, size = 0x2000, scoped, tag = 'input window, operand 1, single buffered']
    #allocation7 [shape = 's32[1]{0}', space=sflag, size = 0x4, scoped, tag = 'scoped memory for tpu_custom_call.1']
    #allocation8 [shape = 'u8[65536]{0}', space=vmem, size = 0x10000, scoped, tag = 'input window, operand 3']
    #allocation9 [shape = 'u8[32768]{0}', space=vmem, size = 0x8000, scoped, tag = 'input window, operand 5, single buffered']
    #allocation10 [shape = 'u8[4096]{0}', space=vmem, size = 0x1000, scoped, tag = 'output window, operand 0, single buffered']
    %12 = vsyncpa [#allocation4], 0
    %13 = vsyncpa [#allocation7], 0
    %14 = vsyncpa [#allocation5], 0
    loop: start=0, step=1, limit=4
    $region2: #{tpu_custom_call.1} parent=1 // loop_pre_header
      _
    $region3: #{tpu_custom_call.1} parent=1 // loop_header
      %s16 = sphi 0, %s20
      %p17 = scmp.ge.s32.totalorder %s16, 4
      %s23 = sphi 0, %s35
      %s24 = sphi 0, %s31
      %s25 = sphi 0, %s23
      %s26 = sphi 0, %s24
      %s27 = sphi 0, %s25
      %s28 = sphi 0, %s26
      %s38 = sphi 0, %s40
      %s41 = sphi 0, %s38
      %s42 = sphi 0, %s41
      %s58 = sphi 0, %s42
      %s62 = sphi 0, %s62
      %s64 = sphi 0, %s62
      %s65 = sphi 0, %s64
      %s79 = sphi 0, %s65
      %s83 = sphi 0, %s83
      %s85 = sphi 0, %s83
      %s86 = sphi 0, %s85
      %s100 = sphi 0, %s86
      %s106 = sphi 0, %s108
      %s109 = sphi 0, %s106
      %s110 = sphi 0, %s109
      %s126 = sphi 0, %s110
      %s132 = sphi 0, %s134
      %s135 = sphi 0, %s132
      %s136 = sphi 0, %s135
      %s152 = sphi 0, %s136
      %s156 = sphi 0, %s156
      %s158 = sphi 0, %s156
      %s159 = sphi 0, %s158
      %s173 = sphi 0, %s159
      %s177 = sphi 0, %s177
      %s179 = sphi 0, %s177
      %s180 = sphi 0, %s179
      %s194 = sphi 0, %s180
      %s200 = sphi 0, %s202
      %s203 = sphi 0, %s200
      %s204 = sphi 0, %s203
      %s220 = sphi 0, %s204
    $region4: #{tpu_custom_call.1} parent=1 // loop_header_branch
      %19 = sbr.rel (%p17) target = $region8
    $region5: #{tpu_custom_call.1} parent=1 // loop_body
      %s21 = ssub.s32 %s16, 1
      %s22 = ssub.s32 %s16, 2
      %s29 = sadd.s32 1, %s24
      %p30 = scmp.ge.s32.totalorder %s29, 2
      %s31 = scalar_select %p30, 0, %s29
      %s32 = sadd.s32 1, %s23
      %s33 = scalar_select %p30, %s32, %s23
      %p34 = scmp.ge.s32.totalorder %s33, 1
      %s35 = scalar_select %p34, 0, %s33
      %s36 = ssub.s32 %s23, %s35
      %p37 = scmp.eq.s32.totalorder %s36, 0
      %s39 = sadd.s32 %s38, 1
      %s40 = scalar_select %p37, %s38, %s39
      %p43 = pneg %p37
      %p44 = scmp.eq.s32.totalorder %s16, 1
      %p45 = por %p43, %p44
      %p46 = scmp.ne.s32.totalorder %s38, %s41
      %p47 = scmp.eq.s32.totalorder %s16, 0
      %p48 = por %p46, %p47
      %p49 = scmp.ne.s32.totalorder %s38, %s41
      %p50 = scmp.eq.s32.totalorder %s21, 1
      %p51 = por %p49, %p50
      %p52 = scmp.ne.s32.totalorder %s41, %s42
      %p53 = scmp.eq.s32.totalorder %s21, 0
      %p54 = por %p52, %p53
      %p55 = scmp.ne.s32.totalorder %s41, %s42
      %p56 = scmp.eq.s32.totalorder %s22, 1
      %p57 = por %p55, %p56
      %p59 = scmp.ne.s32.totalorder %s42, %s58
      %p60 = scmp.eq.s32.totalorder %s22, 0
      %p61 = por %p59, %p60
      %s63 = sadd.s32 %s62, 1
      %p66 = scmp.eq.s32.totalorder %s16, 1
      %p67 = scmp.ne.s32.totalorder %s62, %s64
      %p68 = scmp.eq.s32.totalorder %s16, 0
      %p69 = por %p67, %p68
      %p70 = scmp.ne.s32.totalorder %s62, %s64
      %p71 = scmp.eq.s32.totalorder %s21, 1
      %p72 = por %p70, %p71
      %p73 = scmp.ne.s32.totalorder %s64, %s65
      %p74 = scmp.eq.s32.totalorder %s21, 0
      %p75 = por %p73, %p74
      %p76 = scmp.ne.s32.totalorder %s64, %s65
      %p77 = scmp.eq.s32.totalorder %s22, 1
      %p78 = por %p76, %p77
      %p80 = scmp.ne.s32.totalorder %s65, %s79
      %p81 = scmp.eq.s32.totalorder %s22, 0
      %p82 = por %p80, %p81
      %s84 = sadd.s32 %s83, 1
      %p87 = scmp.eq.s32.totalorder %s16, 1
      %p88 = scmp.ne.s32.totalorder %s83, %s85
      %p89 = scmp.eq.s32.totalorder %s16, 0
      %p90 = por %p88, %p89
      %p91 = scmp.ne.s32.totalorder %s83, %s85
      %p92 = scmp.eq.s32.totalorder %s21, 1
      %p93 = por %p91, %p92
      %p94 = scmp.ne.s32.totalorder %s85, %s86
      %p95 = scmp.eq.s32.totalorder %s21, 0
      %p96 = por %p94, %p95
      %p97 = scmp.ne.s32.totalorder %s85, %s86
      %p98 = scmp.eq.s32.totalorder %s22, 1
      %p99 = por %p97, %p98
      %p101 = scmp.ne.s32.totalorder %s86, %s100
      %p102 = scmp.eq.s32.totalorder %s22, 0
      %p103 = por %p101, %p102
      %s104 = ssub.s32 %s24, %s31
      %p105 = scmp.eq.s32.totalorder %s104, 0
      %s107 = sadd.s32 %s106, 1
      %s108 = scalar_select %p105, %s106, %s107
      %p111 = pneg %p105
      %p112 = scmp.eq.s32.totalorder %s16, 1
      %p113 = por %p111, %p112
      %p114 = scmp.ne.s32.totalorder %s106, %s109
      %p115 = scmp.eq.s32.totalorder %s16, 0
      %p116 = por %p114, %p115
      %p117 = scmp.ne.s32.totalorder %s106, %s109
      %p118 = scmp.eq.s32.totalorder %s21, 1
      %p119 = por %p117, %p118
      %p120 = scmp.ne.s32.totalorder %s109, %s110
      %p121 = scmp.eq.s32.totalorder %s21, 0
      %p122 = por %p120, %p121
      %p123 = scmp.ne.s32.totalorder %s109, %s110
      %p124 = scmp.eq.s32.totalorder %s22, 1
      %p125 = por %p123, %p124
      %p127 = scmp.ne.s32.totalorder %s110, %s126
      %p128 = scmp.eq.s32.totalorder %s22, 0
      %p129 = por %p127, %p128
      %s130 = ssub.s32 %s24, %s31
      %p131 = scmp.eq.s32.totalorder %s130, 0
      %s133 = sadd.s32 %s132, 1
      %s134 = scalar_select %p131, %s132, %s133
      %p137 = pneg %p131
      %p138 = scmp.eq.s32.totalorder %s16, 1
      %p139 = por %p137, %p138
      %p140 = scmp.ne.s32.totalorder %s132, %s135
      %p141 = scmp.eq.s32.totalorder %s16, 0
      %p142 = por %p140, %p141
      %p143 = scmp.ne.s32.totalorder %s132, %s135
      %p144 = scmp.eq.s32.totalorder %s21, 1
      %p145 = por %p143, %p144
      %p146 = scmp.ne.s32.totalorder %s135, %s136
      %p147 = scmp.eq.s32.totalorder %s21, 0
      %p148 = por %p146, %p147
      %p149 = scmp.ne.s32.totalorder %s135, %s136
      %p150 = scmp.eq.s32.totalorder %s22, 1
      %p151 = por %p149, %p150
      %p153 = scmp.ne.s32.totalorder %s136, %s152
      %p154 = scmp.eq.s32.totalorder %s22, 0
      %p155 = por %p153, %p154
      %s157 = sadd.s32 %s156, 1
      %p160 = scmp.eq.s32.totalorder %s16, 1
      %p161 = scmp.ne.s32.totalorder %s156, %s158
      %p162 = scmp.eq.s32.totalorder %s16, 0
      %p163 = por %p161, %p162
      %p164 = scmp.ne.s32.totalorder %s156, %s158
      %p165 = scmp.eq.s32.totalorder %s21, 1
      %p166 = por %p164, %p165
      %p167 = scmp.ne.s32.totalorder %s158, %s159
      %p168 = scmp.eq.s32.totalorder %s21, 0
      %p169 = por %p167, %p168
      %p170 = scmp.ne.s32.totalorder %s158, %s159
      %p171 = scmp.eq.s32.totalorder %s22, 1
      %p172 = por %p170, %p171
      %p174 = scmp.ne.s32.totalorder %s159, %s173
      %p175 = scmp.eq.s32.totalorder %s22, 0
      %p176 = por %p174, %p175
      %s178 = sadd.s32 %s177, 1
      %p181 = scmp.eq.s32.totalorder %s16, 1
      %p182 = scmp.ne.s32.totalorder %s177, %s179
      %p183 = scmp.eq.s32.totalorder %s16, 0
      %p184 = por %p182, %p183
      %p185 = scmp.ne.s32.totalorder %s177, %s179
      %p186 = scmp.eq.s32.totalorder %s21, 1
      %p187 = por %p185, %p186
      %p188 = scmp.ne.s32.totalorder %s179, %s180
      %p189 = scmp.eq.s32.totalorder %s21, 0
      %p190 = por %p188, %p189
      %p191 = scmp.ne.s32.totalorder %s179, %s180
      %p192 = scmp.eq.s32.totalorder %s22, 1
      %p193 = por %p191, %p192
      %p195 = scmp.ne.s32.totalorder %s180, %s194
      %p196 = scmp.eq.s32.totalorder %s22, 0
      %p197 = por %p195, %p196
      %s198 = ssub.s32 %s23, %s35
      %p199 = scmp.eq.s32.totalorder %s198, 0
      %s201 = sadd.s32 %s200, 1
      %s202 = scalar_select %p199, %s200, %s201
      %p205 = pneg %p199
      %p206 = scmp.eq.s32.totalorder %s16, 1
      %p207 = por %p205, %p206
      %p208 = scmp.ne.s32.totalorder %s200, %s203
      %p209 = scmp.eq.s32.totalorder %s16, 0
      %p210 = por %p208, %p209
      %p211 = scmp.ne.s32.totalorder %s200, %s203
      %p212 = scmp.eq.s32.totalorder %s21, 1
      %p213 = por %p211, %p212
      %p214 = scmp.ne.s32.totalorder %s203, %s204
      %p215 = scmp.eq.s32.totalorder %s21, 0
      %p216 = por %p214, %p215
      %p217 = scmp.ne.s32.totalorder %s203, %s204
      %p218 = scmp.eq.s32.totalorder %s22, 1
      %p219 = por %p217, %p218
      %p221 = scmp.ne.s32.totalorder %s204, %s220
      %p222 = scmp.eq.s32.totalorder %s22, 0
      %p223 = por %p221, %p222
      %p224 = scmp.le.s32.totalorder 1, %s16
      %p225 = scmp.lt.s32.totalorder %s16, 3
      %p226 = pnand %p224, %p225
      %p227 = pneg %p226
      // Predicated region
      $region9: #{tpu_custom_call.1} parent=5 // pred_check
        _
      $region10: #{tpu_custom_call.1} parent=5 // pred_check_branch
        %229 = sbr.rel (%p226) target = $region12
      $region11: #{tpu_custom_call.1} parent=5 // pred_region
        %s230 = ssub.s32 %s16, 1
        // Predicated region
        $region13: #{tpu_custom_call.1} parent=11 // pred_check
          %p231 = pneg %p54
        $region14: #{tpu_custom_call.1} parent=11 // pred_check_branch
          %233 = sbr.rel (%p231) target = $region16
        $region15: #{tpu_custom_call.1} parent=11 // pred_region
          %s235 = ssub.s32 128, 128
          %236 = vsyncadd [#allocation4], %s235
          %s237 = smul.addr %s25, 128
          %s238 = scalar_lea.hbm %s0, %s237
          %s240 = sshll.u32 [#allocation3], 4
          %s241 = int_to_ptr.vmem [resolvable:$true] %s240
          %243 = dma.hbm_to_vmem [thread:$0]  %s238, 128, %s241, [#allocation4]
        $region16: #{tpu_custom_call.1} parent=11 // pred_fallthru
          _
        // Predicated region
        $region17: #{tpu_custom_call.1} parent=11 // pred_check
          %p244 = pneg %p75
        $region18: #{tpu_custom_call.1} parent=11 // pred_check_branch
          %246 = sbr.rel (%p244) target = $region20
        $region19: #{tpu_custom_call.1} parent=11 // pred_region
          %s248 = ssub.s32 256, 256
          %249 = vsyncadd [#allocation7], %s248
          %s250 = sshll.u32 [#allocation6], 4
          %s251 = int_to_ptr.vmem [resolvable:$true] %s250
          %256 = dma.hbm_to_vmem [thread:$0]  %s1, 256, %s251, [#allocation7], 64, 64, 4
        $region20: #{tpu_custom_call.1} parent=11 // pred_fallthru
          _
        // Predicated region
        $region21: #{tpu_custom_call.1} parent=11 // pred_check
          %p257 = pneg %p96
        $region22: #{tpu_custom_call.1} parent=11 // pred_check_branch
          %259 = sbr.rel (%p257) target = $region24
        $region23: #{tpu_custom_call.1} parent=11 // pred_region
          _
        $region24: #{tpu_custom_call.1} parent=11 // pred_fallthru
          _
        // Predicated region
        $region25: #{tpu_custom_call.1} parent=11 // pred_check
          %p260 = pneg %p169
        $region26: #{tpu_custom_call.1} parent=11 // pred_check_branch
          %262 = sbr.rel (%p260) target = $region28
        $region27: #{tpu_custom_call.1} parent=11 // pred_region
          %s264 = ssub.s32 1024, 1024
          %265 = vsyncadd [#allocation7], %s264
          %s266 = sshll.u32 [#allocation9], 4
          %s267 = int_to_ptr.vmem [resolvable:$true] %s266
          %272 = dma.hbm_to_vmem [thread:$0]  %s5, 1024, %s267, [#allocation7], 64, 64, 4
        $region28: #{tpu_custom_call.1} parent=11 // pred_fallthru
          _
        // Predicated region
        $region29: #{tpu_custom_call.1} parent=11 // pred_check
          %p273 = pneg %p190
        $region30: #{tpu_custom_call.1} parent=11 // pred_check_branch
          %275 = sbr.rel (%p273) target = $region32
        $region31: #{tpu_custom_call.1} parent=11 // pred_region
          _
        $region32: #{tpu_custom_call.1} parent=11 // pred_fallthru
          _
      $region12: #{tpu_custom_call.1} parent=5 // pred_fallthru
        _
      %p276 = scmp.lt.s32.totalorder %s16, 2
      // Predicated region
      $region33: #{tpu_custom_call.1} parent=5 // pred_check
        %p277 = pneg %p276
      $region34: #{tpu_custom_call.1} parent=5 // pred_check_branch
        %279 = sbr.rel (%p277) target = $region36
      $region35: #{tpu_custom_call.1} parent=5 // pred_region
        // Predicated region
        $region37: #{tpu_custom_call.1} parent=35 // pred_check
          %p280 = pneg %p116
        $region38: #{tpu_custom_call.1} parent=35 // pred_check_branch
          %282 = sbr.rel (%p280) target = $region40
        $region39: #{tpu_custom_call.1} parent=35 // pred_region
          %s283 = sand.u32 %s16, 1
          %s284 = scalar_lea.sflag [#allocation4], %s283
          %s285 = sand.u32 %s106, 1
          %s286 = smul.addr %s285, 64
          %s287 = scalar_lea.vmem [#allocation8], %s286
          %s289 = ssub.s32 1024, 1024
          %290 = vsyncadd %s284, %s289
          %s291 = smul.addr %s24, 16
          %s292 = smul.addr %s291, 64
          %s293 = scalar_lea.hbm %s3, %s292
          %s294 = sshll.u32 %s287, 4
          %s295 = int_to_ptr.vmem [resolvable:$true] %s294
          %300 = dma.hbm_to_vmem [thread:$0]  %s293, 1024, %s295, %s284, 64, 64, 4
        $region40: #{tpu_custom_call.1} parent=35 // pred_fallthru
          _
        // Predicated region
        $region41: #{tpu_custom_call.1} parent=35 // pred_check
          %p301 = pneg %p142
        $region42: #{tpu_custom_call.1} parent=35 // pred_check_branch
          %303 = sbr.rel (%p301) target = $region44
        $region43: #{tpu_custom_call.1} parent=35 // pred_region
          %p304 = scmp.lt.s32.totalorder %s24, 1
          %s305 = scalar_select %p304, %s24, 1
          %s306 = scalar_lea.vmem %s4, %s305
        $region44: #{tpu_custom_call.1} parent=35 // pred_fallthru
          _
      $region36: #{tpu_custom_call.1} parent=5 // pred_fallthru
        _
      %p307 = scmp.le.s32.totalorder 1, %s16
      %p308 = scmp.lt.s32.totalorder %s16, 3
      %p309 = pnand %p307, %p308
      %p310 = pneg %p309
      // Predicated region
      $region45: #{tpu_custom_call.1} parent=5 // pred_check
        _
      $region46: #{tpu_custom_call.1} parent=5 // pred_check_branch
        %312 = sbr.rel (%p309) target = $region48
      $region47: #{tpu_custom_call.1} parent=5 // pred_region
        %s313 = ssub.s32 %s16, 1
        // Predicated region
        $region49: #{tpu_custom_call.1} parent=47 // pred_check
          %p314 = pneg %p54
        $region50: #{tpu_custom_call.1} parent=47 // pred_check_branch
          %316 = sbr.rel (%p314) target = $region52
        $region51: #{tpu_custom_call.1} parent=47 // pred_region
          %317 = dma.done [#allocation4], 128
        $region52: #{tpu_custom_call.1} parent=47 // pred_fallthru
          _
        // Predicated region
        $region53: #{tpu_custom_call.1} parent=47 // pred_check
          %p318 = pneg %p75
        $region54: #{tpu_custom_call.1} parent=47 // pred_check_branch
          %320 = sbr.rel (%p318) target = $region56
        $region55: #{tpu_custom_call.1} parent=47 // pred_region
          %321 = dma.done [#allocation7], 256
        $region56: #{tpu_custom_call.1} parent=47 // pred_fallthru
          _
        %s322 = sand.u32 %s21, 1
        %s323 = scalar_lea.sflag [#allocation4], %s322
        %s324 = sand.u32 %s109, 1
        %s325 = smul.addr %s324, 64
        %s326 = scalar_lea.vmem [#allocation8], %s325
        // Predicated region
        $region57: #{tpu_custom_call.1} parent=47 // pred_check
          %p327 = pneg %p122
        $region58: #{tpu_custom_call.1} parent=47 // pred_check_branch
          %329 = sbr.rel (%p327) target = $region60
        $region59: #{tpu_custom_call.1} parent=47 // pred_region
          %330 = dma.done %s323, 1024
        $region60: #{tpu_custom_call.1} parent=47 // pred_fallthru
          _
        // Predicated region
        $region61: #{tpu_custom_call.1} parent=47 // pred_check
          %p331 = pneg %p169
        $region62: #{tpu_custom_call.1} parent=47 // pred_check_branch
          %333 = sbr.rel (%p331) target = $region64
        $region63: #{tpu_custom_call.1} parent=47 // pred_region
          %334 = dma.done [#allocation7], 1024
        $region64: #{tpu_custom_call.1} parent=47 // pred_fallthru
          _
        %p335 = pneg %p54
        %p336 = pneg %p51
        %p337 = pneg %p75
        %p338 = pneg %p72
        %p339 = pneg %p96
        %p340 = pneg %p93
        %s341 = sand.u32 %s21, 1
        %s342 = scalar_lea.sflag [#allocation4], %s341
        %s343 = sand.u32 %s109, 1
        %s344 = smul.addr %s343, 64
        %s345 = scalar_lea.vmem [#allocation8], %s344
        %p346 = pneg %p122
        %p347 = pneg %p119
        %p348 = scmp.lt.s32.totalorder %s26, 1
        %s349 = scalar_select %p348, %s26, 1
        %s350 = scalar_lea.vmem %s4, %s349
        %p351 = pneg %p148
        %p352 = pneg %p145
        %p353 = pneg %p169
        %p354 = pneg %p166
        %p355 = pneg %p190
        %p356 = pneg %p187
        %p357 = pneg %p216
        %p358 = pneg %p213
        %p359 = scmp.lt.s32.totalorder %s26, 1
        %s360 = scalar_select %p359, %s26, 1
        %s361 = scalar_lea.vmem %s4, %s360
        %p363 = scmp.eq.s32.totalorder %s26, 0
        // Predicated region
        $region65: #{tpu_custom_call.1} parent=47 // pred_check
          %p364 = pneg %p363
        $region66: #{tpu_custom_call.1} parent=47 // pred_check_branch
          %366 = sbr.rel (%p364) target = $region68
        $region67: #{tpu_custom_call.1} parent=47 // pred_region
          %v367 = vld [vmem:[#allocation3] sm:$0xff]
          %v368 = vpack.c.bf16 %v367, %v367
          %v369 = vld [vmem:[#allocation6] sm:$0xf]
          %v370 = vld [vmem:[#allocation6 + $0x4] sm:$0xf]
          %v371 = vld [vmem:[#allocation6 + $0x8] sm:$0xf]
          %v372 = vld [vmem:[#allocation6 + $0xc] sm:$0xf]
          %v373 = vld [vmem:[%s2] sm:$0x1]
          %v375 = vlaneseq
          %v376 = vshrl.u32 %v375, 7
          %v377 = vsub.s32 0, %v376
          %v378 = vrot.slane %v373, %v377
          %v384 = vunpack.c.l.b16 %v369
          %v385 = vunpack.c.l.b16 %v370
          %v386 = vunpack.c.l.b16 %v371
          %v387 = vunpack.c.l.b16 %v372
          %v388 = vpack.c.b16 %v385, %v384
          %v389 = vpack.c.b16 %v387, %v386
          %vm392 = vcmask 261120
          %v394 = vsel %vm392, %v368, 0
          %396 = vmatprep.subr.bf16.mxu0 0
          %397 = vmatpush1.bf16.msra.mxu0 %v388
          %398 = vmatprep.subr.bf16.mxu0 0
          %399 = vmatpush1.bf16.msra.mxu0 %v389
          %400 = vmatprep.subr.bf16.mxu0 0
          %401 = vmatpush1.bf16.msra.mxu0 0
          %402 = vmatprep.subr.bf16.mxu0 0
          %403 = vmatpush1.bf16.msra.mxu0 0
          %404 = vmatprep.subr.bf16.mxu0 0
          %405 = vmatpush1.bf16.msra.mxu0 0
          %406 = vmatprep.subr.bf16.mxu0 0
          %407 = vmatpush1.bf16.msra.mxu0 0
          %408 = vmatprep.subr.bf16.mxu0 0
          %409 = vmatpush1.bf16.msra.mxu0 0
          %410 = vmatprep.subr.bf16.mxu0 0
          %411 = vmatpush1.bf16.msra.mxu0 0
          %412 = vmatprep.subr.bf16.mxu0 0
          %413 = vmatpush1.bf16.msra.mxu0 0
          %414 = vmatprep.subr.bf16.mxu0 0
          %415 = vmatpush1.bf16.msra.mxu0 0
          %416 = vmatprep.subr.bf16.mxu0 0
          %417 = vmatpush1.bf16.msra.mxu0 0
          %418 = vmatprep.subr.bf16.mxu0 0
          %419 = vmatpush1.bf16.msra.mxu0 0
          %420 = vmatprep.subr.bf16.mxu0 0
          %421 = vmatpush1.bf16.msra.mxu0 0
          %422 = vmatprep.subr.bf16.mxu0 0
          %423 = vmatpush1.bf16.msra.mxu0 0
          %424 = vmatprep.subr.bf16.mxu0 0
          %425 = vmatpush1.bf16.msra.mxu0 0
          %426 = vmatprep.subr.bf16.mxu0 0
          %427 = vmatpush1.bf16.msra.mxu0 0
          %428 = vmatprep.mubr.bf16.mxu0 0
          %429 = vmatmul.mubr.bf16.gmra.mrb[0].mxu0 %v394
          %v430 = vpop.f32.mrb[0].mxu0
          %v431 = vadd.f32 %v378, %v430
          %v432 = vpop.f32.mrb[0].mxu0
          %v433 = vpop.f32.mrb[0].mxu0
          %v434 = vpop.f32.mrb[0].mxu0
          %435 = vdwg.mxu0
          %v436 = vmax.f32 %v431, 0.0
          %437 = vst [vmem:[#allocation2] sm:$0xff] %v436
        $region68: #{tpu_custom_call.1} parent=47 // pred_fallthru
          _
        %v438 = vld [vmem:[#allocation2] sm:$0xff]
        %v439 = vpack.c.bf16 %v438, %v438
        %v440 = vld [vmem:[%s326] sm:$0xf]
        %v441 = vld [vmem:[%s326 + $0x4] sm:$0xf]
        %v442 = vld [vmem:[%s326 + $0x8] sm:$0xf]
        %v443 = vld [vmem:[%s326 + $0xc] sm:$0xf]
        %v444 = vld [vmem:[%s326 + $0x10] sm:$0xf]
        %v445 = vld [vmem:[%s326 + $0x14] sm:$0xf]
        %v446 = vld [vmem:[%s326 + $0x18] sm:$0xf]
        %v447 = vld [vmem:[%s326 + $0x1c] sm:$0xf]
        %v448 = vld [vmem:[%s326 + $0x20] sm:$0xf]
        %v449 = vld [vmem:[%s326 + $0x24] sm:$0xf]
        %v450 = vld [vmem:[%s326 + $0x28] sm:$0xf]
        %v451 = vld [vmem:[%s326 + $0x2c] sm:$0xf]
        %v452 = vld [vmem:[%s326 + $0x30] sm:$0xf]
        %v453 = vld [vmem:[%s326 + $0x34] sm:$0xf]
        %v454 = vld [vmem:[%s326 + $0x38] sm:$0xf]
        %v455 = vld [vmem:[%s326 + $0x3c] sm:$0xf]
        %v456 = vld [vmem:[%s361] sm:$0x1]
        %v458 = vlaneseq
        %v459 = vshrl.u32 %v458, 7
        %v460 = vsub.s32 0, %v459
        %v461 = vrot.slane %v456, %v460
        %v479 = vunpack.c.l.b16 %v440
        %v480 = vunpack.c.l.b16 %v441
        %v481 = vunpack.c.l.b16 %v442
        %v482 = vunpack.c.l.b16 %v443
        %v483 = vunpack.c.l.b16 %v444
        %v484 = vunpack.c.l.b16 %v445
        %v485 = vunpack.c.l.b16 %v446
        %v486 = vunpack.c.l.b16 %v447
        %v487 = vunpack.c.l.b16 %v448
        %v488 = vunpack.c.l.b16 %v449
        %v489 = vunpack.c.l.b16 %v450
        %v490 = vunpack.c.l.b16 %v451
        %v491 = vunpack.c.l.b16 %v452
        %v492 = vunpack.c.l.b16 %v453
        %v493 = vunpack.c.l.b16 %v454
        %v494 = vunpack.c.l.b16 %v455
        %v495 = vpack.c.b16 %v480, %v479
        %v496 = vpack.c.b16 %v482, %v481
        %v497 = vpack.c.b16 %v484, %v483
        %v498 = vpack.c.b16 %v486, %v485
        %v499 = vpack.c.b16 %v488, %v487
        %v500 = vpack.c.b16 %v490, %v489
        %v501 = vpack.c.b16 %v492, %v491
        %v502 = vpack.c.b16 %v494, %v493
        %511 = vmatprep.subr.bf16.mxu0 0
        %512 = vmatpush1.bf16.msra.mxu0 %v495
        %513 = vmatprep.subr.bf16.mxu0 0
        %514 = vmatpush1.bf16.msra.mxu0 %v496
        %515 = vmatprep.subr.bf16.mxu0 0
        %516 = vmatpush1.bf16.msra.mxu0 %v497
        %517 = vmatprep.subr.bf16.mxu0 0
        %518 = vmatpush1.bf16.msra.mxu0 %v498
        %519 = vmatprep.subr.bf16.mxu0 0
        %520 = vmatpush1.bf16.msra.mxu0 %v499
        %521 = vmatprep.subr.bf16.mxu0 0
        %522 = vmatpush1.bf16.msra.mxu0 %v500
        %523 = vmatprep.subr.bf16.mxu0 0
        %524 = vmatpush1.bf16.msra.mxu0 %v501
        %525 = vmatprep.subr.bf16.mxu0 0
        %526 = vmatpush1.bf16.msra.mxu0 %v502
        %527 = vmatprep.subr.bf16.mxu0 0
        %528 = vmatpush1.bf16.msra.mxu0 0
        %529 = vmatprep.subr.bf16.mxu0 0
        %530 = vmatpush1.bf16.msra.mxu0 0
        %531 = vmatprep.subr.bf16.mxu0 0
        %532 = vmatpush1.bf16.msra.mxu0 0
        %533 = vmatprep.subr.bf16.mxu0 0
        %534 = vmatpush1.bf16.msra.mxu0 0
        %535 = vmatprep.subr.bf16.mxu0 0
        %536 = vmatpush1.bf16.msra.mxu0 0
        %537 = vmatprep.subr.bf16.mxu0 0
        %538 = vmatpush1.bf16.msra.mxu0 0
        %539 = vmatprep.subr.bf16.mxu0 0
        %540 = vmatpush1.bf16.msra.mxu0 0
        %541 = vmatprep.subr.bf16.mxu0 0
        %542 = vmatpush1.bf16.msra.mxu0 0
        %543 = vmatprep.mubr.bf16.mxu0 0
        %544 = vmatmul.mubr.bf16.gmra.mrb[0].mxu0 %v439
        %v545 = vpop.f32.mrb[0].mxu0
        %v546 = vadd.f32 %v461, %v545
        %v547 = vpop.f32.mrb[0].mxu0
        %v548 = vpop.f32.mrb[0].mxu0
        %v549 = vpop.f32.mrb[0].mxu0
        %550 = vdwg.mxu0
        %v551 = vmax.f32 %v546, 0.0
        %552 = vst [vmem:[#allocation2] sm:$0xff] %v551
        %p553 = scmp.eq.s32.totalorder %s26, 1
        // Predicated region
        $region69: #{tpu_custom_call.1} parent=47 // pred_check
          %p554 = pneg %p553
        $region70: #{tpu_custom_call.1} parent=47 // pred_check_branch
          %556 = sbr.rel (%p554) target = $region72
        $region71: #{tpu_custom_call.1} parent=47 // pred_region
          %v557 = vld [vmem:[#allocation2] sm:$0xff]
          %v558 = vpack.c.bf16 %v557, %v557
          %v559 = vld [vmem:[#allocation9] sm:$0xf]
          %v560 = vld [vmem:[#allocation9 + $0x4] sm:$0xf]
          %v561 = vld [vmem:[#allocation9 + $0x8] sm:$0xf]
          %v562 = vld [vmem:[#allocation9 + $0xc] sm:$0xf]
          %v563 = vld [vmem:[#allocation9 + $0x10] sm:$0xf]
          %v564 = vld [vmem:[#allocation9 + $0x14] sm:$0xf]
          %v565 = vld [vmem:[#allocation9 + $0x18] sm:$0xf]
          %v566 = vld [vmem:[#allocation9 + $0x1c] sm:$0xf]
          %v567 = vld [vmem:[#allocation9 + $0x20] sm:$0xf]
          %v568 = vld [vmem:[#allocation9 + $0x24] sm:$0xf]
          %v569 = vld [vmem:[#allocation9 + $0x28] sm:$0xf]
          %v570 = vld [vmem:[#allocation9 + $0x2c] sm:$0xf]
          %v571 = vld [vmem:[#allocation9 + $0x30] sm:$0xf]
          %v572 = vld [vmem:[#allocation9 + $0x34] sm:$0xf]
          %v573 = vld [vmem:[#allocation9 + $0x38] sm:$0xf]
          %v574 = vld [vmem:[#allocation9 + $0x3c] sm:$0xf]
          %v575 = vld [vmem:[%s6] sm:$0x1]
          %v577 = vlaneseq
          %v578 = vshrl.u32 %v577, 7
          %v579 = vsub.s32 0, %v578
          %v580 = vrot.slane %v575, %v579
          %v598 = vunpack.c.l.b16 %v559
          %v599 = vunpack.c.l.b16 %v560
          %v600 = vunpack.c.l.b16 %v561
          %v601 = vunpack.c.l.b16 %v562
          %v602 = vunpack.c.l.b16 %v563
          %v603 = vunpack.c.l.b16 %v564
          %v604 = vunpack.c.l.b16 %v565
          %v605 = vunpack.c.l.b16 %v566
          %v606 = vunpack.c.l.b16 %v567
          %v607 = vunpack.c.l.b16 %v568
          %v608 = vunpack.c.l.b16 %v569
          %v609 = vunpack.c.l.b16 %v570
          %v610 = vunpack.c.l.b16 %v571
          %v611 = vunpack.c.l.b16 %v572
          %v612 = vunpack.c.l.b16 %v573
          %v613 = vunpack.c.l.b16 %v574
          %v614 = vpack.c.b16 %v599, %v598
          %v615 = vpack.c.b16 %v601, %v600
          %v616 = vpack.c.b16 %v603, %v602
          %v617 = vpack.c.b16 %v605, %v604
          %v618 = vpack.c.b16 %v607, %v606
          %v619 = vpack.c.b16 %v609, %v608
          %v620 = vpack.c.b16 %v611, %v610
          %v621 = vpack.c.b16 %v613, %v612
          %630 = vmatprep.subr.bf16.mxu0 0
          %631 = vmatpush1.bf16.msra.mxu0 %v614
          %632 = vmatprep.subr.bf16.mxu0 0
          %633 = vmatpush1.bf16.msra.mxu0 %v615
          %634 = vmatprep.subr.bf16.mxu0 0
          %635 = vmatpush1.bf16.msra.mxu0 %v616
          %636 = vmatprep.subr.bf16.mxu0 0
          %637 = vmatpush1.bf16.msra.mxu0 %v617
          %638 = vmatprep.subr.bf16.mxu0 0
          %639 = vmatpush1.bf16.msra.mxu0 %v618
          %640 = vmatprep.subr.bf16.mxu0 0
          %641 = vmatpush1.bf16.msra.mxu0 %v619
          %642 = vmatprep.subr.bf16.mxu0 0
          %643 = vmatpush1.bf16.msra.mxu0 %v620
          %644 = vmatprep.subr.bf16.mxu0 0
          %645 = vmatpush1.bf16.msra.mxu0 %v621
          %646 = vmatprep.subr.bf16.mxu0 0
          %647 = vmatpush1.bf16.msra.mxu0 0
          %648 = vmatprep.subr.bf16.mxu0 0
          %649 = vmatpush1.bf16.msra.mxu0 0
          %650 = vmatprep.subr.bf16.mxu0 0
          %651 = vmatpush1.bf16.msra.mxu0 0
          %652 = vmatprep.subr.bf16.mxu0 0
          %653 = vmatpush1.bf16.msra.mxu0 0
          %654 = vmatprep.subr.bf16.mxu0 0
          %655 = vmatpush1.bf16.msra.mxu0 0
          %656 = vmatprep.subr.bf16.mxu0 0
          %657 = vmatpush1.bf16.msra.mxu0 0
          %658 = vmatprep.subr.bf16.mxu0 0
          %659 = vmatpush1.bf16.msra.mxu0 0
          %660 = vmatprep.subr.bf16.mxu0 0
          %661 = vmatpush1.bf16.msra.mxu0 0
          %662 = vmatprep.mubr.bf16.mxu0 0
          %663 = vmatmul.mubr.bf16.gmra.mrb[0].mxu0 %v558
          %v664 = vpop.f32.mrb[0].mxu0
          %v665 = vadd.f32 %v580, %v664
          %v666 = vpop.f32.mrb[0].mxu0
          %v667 = vpop.f32.mrb[0].mxu0
          %v668 = vpop.f32.mrb[0].mxu0
          %669 = vdwg.mxu0
          %670 = vst [vmem:[#allocation10] sm:$0xff] %v665
        $region72: #{tpu_custom_call.1} parent=47 // pred_fallthru
          _
        // Predicated region
        $region73: #{tpu_custom_call.1} parent=47 // pred_check
          %p671 = pneg %p213
        $region74: #{tpu_custom_call.1} parent=47 // pred_check_branch
          %673 = sbr.rel (%p671) target = $region76
        $region75: #{tpu_custom_call.1} parent=47 // pred_region
          %s675 = ssub.s32 128, 128
          %676 = vsyncadd [#allocation5], %s675
          %s677 = smul.addr %s25, 128
          %s678 = scalar_lea.hbm %s7, %s677
          %s680 = sshll.u32 [#allocation10], 4
          %s681 = int_to_ptr.vmem [resolvable:$true] %s680
          %683 = dma.vmem_to_hbm [thread:$0]  %s681, 128, %s678, [#allocation5]
        $region76: #{tpu_custom_call.1} parent=47 // pred_fallthru
          _
        // Predicated region
        $region77: #{tpu_custom_call.1} parent=47 // pred_check
          %p684 = pneg %p213
        $region78: #{tpu_custom_call.1} parent=47 // pred_check_branch
          %686 = sbr.rel (%p684) target = $region80
        $region79: #{tpu_custom_call.1} parent=47 // pred_region
          %687 = dma.done [#allocation5], 128
        $region80: #{tpu_custom_call.1} parent=47 // pred_fallthru
          _
      $region48: #{tpu_custom_call.1} parent=5 // pred_fallthru
        _
      %p688 = scmp.le.s32.totalorder 2, %s16
      // Predicated region
      $region81: #{tpu_custom_call.1} parent=5 // pred_check
        %p689 = pneg %p688
      $region82: #{tpu_custom_call.1} parent=5 // pred_check_branch
        %691 = sbr.rel (%p689) target = $region84
      $region83: #{tpu_custom_call.1} parent=5 // pred_region
        %s692 = ssub.s32 %s16, 2
      $region84: #{tpu_custom_call.1} parent=5 // pred_fallthru
        _
    $region6: #{tpu_custom_call.1} parent=1 // loop_footer
      %s20 = sadd.s32 1, %s16
    $region7: #{tpu_custom_call.1} parent=1 // loop_footer_branch
      %15 = sbr.rel target = $region3
    $region8: #{tpu_custom_call.1} parent=1 // loop_exit
      _
    %693 = vsyncpa [#allocation4], 1
    %s694 = scalar_lea.sflag [#allocation4], 1
    %695 = vsyncpa %s694, 1
    %696 = vsyncpa [#allocation7], 1
    %697 = vsyncpa [#allocation5], 1
    %s698 = scalar_lea.sflag [#allocation5], 1
    %699 = vsyncpa %s698, 1

</llo_original>
